<compile_context>
chip_gen: v5e
topology: v5e:2x2
jax: 0.10.0
libtpu: 0.0.40
codegen_flags: <defaults>
</compile_context>

<pallas_src>
import functools

import jax
import jax.numpy as jnp
from jax import lax
from jax.experimental import pallas as pl
from jax.experimental.pallas import tpu as pltpu

LN_EPS = 1e-5


def _round_up(x: int, m: int) -> int:
    return (x + m - 1) // m * m


def _gene_encoder_kernel(ids_ref, emb_ref, gamma_ref, beta_ref, out_ref, *, d_true):
    # ids_ref   : (TQ, 1) int32              token ids for this tile (VMEM)
    # emb_ref   : (n_split, V, D_pad) bf16   table split into bf16 "digits"
    # gamma_ref : (1, D_pad) float32         LayerNorm weight (zero-padded)
    # beta_ref  : (1, D_pad) float32         LayerNorm bias   (zero-padded)
    # out_ref   : (TQ, D_pad)                output tile
    ids = ids_ref[...]                                   # (TQ, 1)
    tq = ids.shape[0]
    n_split, v, d_pad = emb_ref.shape

    # In-VMEM gather: one-hot (TQ, V) @ bf16 table parts on the MXU.  0/1 rows
    # select exactly; summing the bf16 hi/mid/lo parts in f32 reconstructs the
    # original f32 row to <=1 ulp.  Out-of-range ids produce a zero row (which
    # LayerNorm maps to beta), never an OOB access.
    onehot = (ids == lax.broadcasted_iota(jnp.int32, (tq, v), 1)).astype(jnp.bfloat16)
    x = jnp.dot(onehot, emb_ref[0], preferred_element_type=jnp.float32)   # (TQ, D_pad) f32
    for s in range(1, n_split):                          # static unroll, n_split <= 3
        x = x + jnp.dot(onehot, emb_ref[s], preferred_element_type=jnp.float32)

    # One-pass LayerNorm statistics over the true D (padded lanes are zero and
    # contribute nothing to the sums).
    inv_d = 1.0 / float(d_true)
    s1 = jnp.sum(x, axis=-1, keepdims=True)              # (TQ, 1)
    s2 = jnp.sum(x * x, axis=-1, keepdims=True)          # (TQ, 1)
    mean = s1 * inv_d
    var = jnp.maximum(s2 * inv_d - mean * mean, 0.0)
    inv = lax.rsqrt(var + LN_EPS)
    y = (x - mean) * inv * gamma_ref[...] + beta_ref[...]
    out_ref[...] = y.astype(out_ref.dtype)


def gene_encoder(ids, emb_table, gamma, beta, *, tq=None, out_dtype=None):
    """ids: (B, S) int; emb_table: (V, D); gamma/beta: (D,).

    Returns (B, S, D) in `out_dtype` (defaults to the table's native dtype)."""
    batch, seq = ids.shape
    V, D = emb_table.shape
    N = batch * seq
    if out_dtype is None:
        out_dtype = emb_table.dtype                      # follow the weights' dtype

    # Lane-dense output: pad D to a multiple of 128 (no-op when already dense).
    D_pad = _round_up(D, 128)

    # Exact bf16 split of the table (hi/mid/lo digits).  bf16 tables need a
    # single part; f32 tables need three (3 x 8 mantissa bits >= f32's 24).
    n_split = 1 if emb_table.dtype == jnp.bfloat16 else 3
    table_f32 = emb_table.astype(jnp.float32)
    if D_pad != D:
        table_f32 = jnp.pad(table_f32, ((0, 0), (0, D_pad - D)))
    parts = []
    resid = table_f32
    for _ in range(n_split):
        p = resid.astype(jnp.bfloat16)
        parts.append(p)
        resid = resid - p.astype(jnp.float32)
    emb_stacked = jnp.stack(parts, axis=0)               # (n_split, V, D_pad) bf16

    # Token tile size: multiple of 8, capped by a VMEM-aware bound (v7x has only
    # 64 MiB VMEM), and chosen so the "parallel" token grid has >=2 steps when
    # possible (v7x has 2 TensorCores per chip).
    if tq is None:
        row_bytes = 4 * (6 * D_pad + max(n_split * V, 128))
        cap = min(512, max(64, (16 << 20) // max(row_bytes, 1)))
        cap = max(8, cap // 8 * 8)
        tq = min(cap, max(8, _round_up((N + 1) // 2, 8)))
    tq = max(8, _round_up(tq, 8))
    n_pad = _round_up(N, tq)

    ids_flat = ids.reshape(N).astype(jnp.int32)
    if n_pad != N:
        ids_flat = jnp.pad(ids_flat, (0, n_pad - N))
    ids2d = ids_flat.reshape(n_pad, 1)                   # (N_pad, 1) for VMEM tiles

    gamma2d = jnp.pad(gamma.astype(jnp.float32), (0, D_pad - D)).reshape(1, D_pad)
    beta2d = jnp.pad(beta.astype(jnp.float32), (0, D_pad - D)).reshape(1, D_pad)

    grid_spec = pltpu.PrefetchScalarGridSpec(
        num_scalar_prefetch=0,
        grid=(n_pad // tq,),
        in_specs=[
            pl.BlockSpec((tq, 1), lambda i: (i, 0)),               # ids tile
            pl.BlockSpec((n_split, V, D_pad), lambda i: (0, 0, 0)),  # full table, resident
            pl.BlockSpec((1, D_pad), lambda i: (0, 0)),            # gamma
            pl.BlockSpec((1, D_pad), lambda i: (0, 0)),            # beta
        ],
        out_specs=pl.BlockSpec((tq, D_pad), lambda i: (i, 0)),
    )

    out_itemsize = jnp.dtype(out_dtype).itemsize
    # Explicit VMEM budget (double-buffered blocks + in-kernel intermediates),
    # kept well under v7x's 64 MiB physical VMEM.
    vmem_budget = (
        2 * n_split * V * D_pad * 2          # table blocks (bf16)
        + 2 * tq * D_pad * out_itemsize      # output blocks
        + 2 * tq * 128 * 4                   # ids blocks (lane-padded)
        + 4 * D_pad * 4                      # gamma / beta
        + tq * max(n_split * V, 128) * 4     # one-hot intermediate
        + 6 * tq * D_pad * 4                 # x / stats / y intermediates
    )
    vmem_limit = int(min(64 << 20, max(int(1.5 * vmem_budget), 16 << 20)))

    cost = pl.CostEstimate(
        flops=2 * n_pad * n_split * V * D_pad + 10 * n_pad * D_pad,
        transcendentals=n_pad,
        bytes_accessed=(n_pad * 4                          # ids
                        + n_split * V * D_pad * 2          # table (one-time)
                        + 2 * D_pad * 4                    # gamma / beta
                        + n_pad * D_pad * out_itemsize),   # output writeback
    )

    out_flat = pl.pallas_call(
        functools.partial(_gene_encoder_kernel, d_true=D),
        out_shape=jax.ShapeDtypeStruct((n_pad, D_pad), out_dtype),
        grid_spec=grid_spec,
        compiler_params=pltpu.CompilerParams(
            dimension_semantics=("parallel",),
            vmem_limit_bytes=vmem_limit),
        cost_estimate=cost,
    )(ids2d, emb_stacked, gamma2d, beta2d)

    return out_flat[:N, :D].reshape(batch, seq, D)


def gene_encoder_ref(ids, emb_table, gamma, beta):
    x = emb_table[ids].astype(jnp.float32)               # (B, S, D)
    mean = jnp.mean(x, axis=-1, keepdims=True)
    var = jnp.mean((x - mean) ** 2, axis=-1, keepdims=True)
    return (x - mean) * lax.rsqrt(var + LN_EPS) * gamma + beta


if __name__ == "__main__":
    # Module hyperparameters (synthetic, deterministic init).
    num_embeddings = 64
    embedding_dim = 128
    padding_idx = 0
    batch, seq = 2, 8

    key = jax.random.PRNGKey(0)
    k_emb, k_ids = jax.random.split(key)

    # nn.Embedding init ~ N(0,1); padding_idx row zeroed (forward is a plain lookup).
    emb_table = jax.random.normal(k_emb, (num_embeddings, embedding_dim), dtype=jnp.float32)
    emb_table = emb_table.at[padding_idx].set(0.0)
    # nn.LayerNorm init: weight=1, bias=0.
    gamma = jnp.ones((embedding_dim,), jnp.float32)
    beta = jnp.zeros((embedding_dim,), jnp.float32)

    ids = jax.random.randint(k_ids, (batch, seq), 0, num_embeddings, dtype=jnp.int32)

    out = gene_encoder(ids, emb_table, gamma, beta)
    out = jax.block_until_ready(out)

    ref = gene_encoder_ref(ids, emb_table, gamma, beta)
    assert out.shape == (batch, seq, embedding_dim)
    assert out.dtype == emb_table.dtype
    assert jnp.allclose(out, ref, atol=2e-5, rtol=2e-5), \
        float(jnp.max(jnp.abs(out.astype(jnp.float32) - ref)))

    print("KERNEL_OK")
</pallas_src>

<mosaic_0001>
module attributes {stable_mosaic.version = 11 : i64} {
  func.func @_gene_encoder_kernel(%arg0: i32, %arg1: memref<8x1xi32, #tpu.memory_space<vmem>>, %arg2: memref<3x64x128xbf16, #tpu.memory_space<vmem>>, %arg3: memref<1x128xf32, #tpu.memory_space<vmem>>, %arg4: memref<1x128xf32, #tpu.memory_space<vmem>>, %arg5: memref<8x128xf32, #tpu.memory_space<vmem>>) attributes {dimension_semantics = [#tpu.dimension_semantics<parallel>], iteration_bounds = array<i64: 2>, scalar_prefetch = 0 : i64, scratch_operands = 0 : i64, tpu.core_type = #tpu.core_type<tc>, window_params = [{transform_indices = @transform_0, window_bounds = array<i64: 8, 1>}, {pipeline_mode = #tpu.pipeline_mode<synchronous>, transform_indices = @transform_1, window_bounds = array<i64: 3, 64, 128>}, {pipeline_mode = #tpu.pipeline_mode<synchronous>, transform_indices = @transform_2, window_bounds = array<i64: 1, 128>}, {pipeline_mode = #tpu.pipeline_mode<synchronous>, transform_indices = @transform_3, window_bounds = array<i64: 1, 128>}, {transform_indices = @transform_4, window_bounds = array<i64: 8, 128>}]} {
    %c0 = arith.constant 0 : index
    %c0_0 = arith.constant 0 : index
    %0 = vector.load %arg1[%c0, %c0_0] : memref<8x1xi32, #tpu.memory_space<vmem>>, vector<8x1xi32>
    %1 = tpu.iota {dimensions = array<i32: 1>} : vector<8x64xi32>
    %2 = vector.broadcast %0 : vector<8x1xi32> to vector<8x64xi32>
    %3 = arith.cmpi eq, %2, %1 : vector<8x64xi32>
    %4 = arith.extui %3 : vector<8x64xi1> to vector<8x64xi32>
    %5 = arith.sitofp %4 : vector<8x64xi32> to vector<8x64xf32>
    %6 = arith.truncf %5 : vector<8x64xf32> to vector<8x64xbf16>
    %c0_1 = arith.constant 0 : index
    %c0_2 = arith.constant 0 : index
    %c0_3 = arith.constant 0 : index
    %7 = vector.load %arg2[%c0_1, %c0_2, %c0_3] : memref<3x64x128xbf16, #tpu.memory_space<vmem>>, vector<1x64x128xbf16>
    %8 = vector.shape_cast %7 : vector<1x64x128xbf16> to vector<64x128xbf16>
    %cst = arith.constant dense<0.000000e+00> : vector<8x128xf32>
    %9 = tpu.matmul %6, %8, %cst {dimension_numbers = #tpu.dot_dimension_numbers<[1], [0], [0], [1], [0, 0, 1, 1], [], []>} : vector<8x64xbf16>, vector<64x128xbf16>, vector<8x128xf32> -> vector<8x128xf32>
    %c1 = arith.constant 1 : index
    %c0_4 = arith.constant 0 : index
    %c0_5 = arith.constant 0 : index
    %10 = vector.load %arg2[%c1, %c0_4, %c0_5] : memref<3x64x128xbf16, #tpu.memory_space<vmem>>, vector<1x64x128xbf16>
    %11 = vector.shape_cast %10 : vector<1x64x128xbf16> to vector<64x128xbf16>
    %cst_6 = arith.constant dense<0.000000e+00> : vector<8x128xf32>
    %12 = tpu.matmul %6, %11, %cst_6 {dimension_numbers = #tpu.dot_dimension_numbers<[1], [0], [0], [1], [0, 0, 1, 1], [], []>} : vector<8x64xbf16>, vector<64x128xbf16>, vector<8x128xf32> -> vector<8x128xf32>
    %13 = arith.addf %9, %12 : vector<8x128xf32>
    %c2 = arith.constant 2 : index
    %c0_7 = arith.constant 0 : index
    %c0_8 = arith.constant 0 : index
    %14 = vector.load %arg2[%c2, %c0_7, %c0_8] : memref<3x64x128xbf16, #tpu.memory_space<vmem>>, vector<1x64x128xbf16>
    %15 = vector.shape_cast %14 : vector<1x64x128xbf16> to vector<64x128xbf16>
    %cst_9 = arith.constant dense<0.000000e+00> : vector<8x128xf32>
    %16 = tpu.matmul %6, %15, %cst_9 {dimension_numbers = #tpu.dot_dimension_numbers<[1], [0], [0], [1], [0, 0, 1, 1], [], []>} : vector<8x64xbf16>, vector<64x128xbf16>, vector<8x128xf32> -> vector<8x128xf32>
    %17 = arith.addf %13, %16 : vector<8x128xf32>
    %cst_10 = arith.constant dense<0.000000e+00> : vector<8xf32>
    %18 = vector.multi_reduction <add>, %17, %cst_10 [1] : vector<8x128xf32> to vector<8xf32>
    %19 = vector.shape_cast %18 : vector<8xf32> to vector<8x1xf32>
    %20 = arith.mulf %17, %17 : vector<8x128xf32>
    %cst_11 = arith.constant dense<0.000000e+00> : vector<8xf32>
    %21 = vector.multi_reduction <add>, %20, %cst_11 [1] : vector<8x128xf32> to vector<8xf32>
    %22 = vector.shape_cast %21 : vector<8xf32> to vector<8x1xf32>
    %cst_12 = arith.constant 7.812500e-03 : f32
    %23 = vector.broadcast %cst_12 : f32 to vector<8x1xf32>
    %24 = arith.mulf %19, %23 : vector<8x1xf32>
    %cst_13 = arith.constant 7.812500e-03 : f32
    %25 = vector.broadcast %cst_13 : f32 to vector<8x1xf32>
    %26 = arith.mulf %22, %25 : vector<8x1xf32>
    %27 = arith.mulf %24, %24 : vector<8x1xf32>
    %28 = arith.subf %26, %27 : vector<8x1xf32>
    %cst_14 = arith.constant 0.000000e+00 : f32
    %29 = vector.broadcast %cst_14 : f32 to vector<8x1xf32>
    %30 = arith.maximumf %28, %29 : vector<8x1xf32>
    %cst_15 = arith.constant 9.99999974E-6 : f32
    %31 = vector.broadcast %cst_15 : f32 to vector<8x1xf32>
    %32 = arith.addf %30, %31 : vector<8x1xf32>
    %33 = math.rsqrt %32 : vector<8x1xf32>
    %34 = vector.broadcast %24 : vector<8x1xf32> to vector<8x128xf32>
    %35 = arith.subf %17, %34 : vector<8x128xf32>
    %36 = vector.broadcast %33 : vector<8x1xf32> to vector<8x128xf32>
    %37 = arith.mulf %35, %36 : vector<8x128xf32>
    %c0_16 = arith.constant 0 : index
    %c0_17 = arith.constant 0 : index
    %38 = vector.load %arg3[%c0_16, %c0_17] : memref<1x128xf32, #tpu.memory_space<vmem>>, vector<1x128xf32>
    %39 = vector.broadcast %38 : vector<1x128xf32> to vector<8x128xf32>
    %40 = arith.mulf %37, %39 : vector<8x128xf32>
    %c0_18 = arith.constant 0 : index
    %c0_19 = arith.constant 0 : index
    %41 = vector.load %arg4[%c0_18, %c0_19] : memref<1x128xf32, #tpu.memory_space<vmem>>, vector<1x128xf32>
    %42 = vector.broadcast %41 : vector<1x128xf32> to vector<8x128xf32>
    %43 = arith.addf %40, %42 : vector<8x128xf32>
    %c0_20 = arith.constant 0 : index
    %c0_21 = arith.constant 0 : index
    %44 = vector.load %arg5[%c0_20, %c0_21] : memref<8x128xf32, #tpu.memory_space<vmem>>, vector<8x128xf32>
    tpu.vector_store %arg5[%c0_20, %c0_21], %43 {strides = array<i32>} : memref<8x128xf32, #tpu.memory_space<vmem>>, vector<8x128xf32>,
    return
  }
  func.func @transform_0(%arg0: i32) -> (i32, i32) {
    %c0_i32 = arith.constant 0 : i32
    %c0_i32_0 = arith.constant 0 : i32
    return %arg0, %c0_i32 : i32, i32
  }
  func.func @transform_1(%arg0: i32) -> (i32, i32, i32) {
    %c0_i32 = arith.constant 0 : i32
    %c0_i32_0 = arith.constant 0 : i32
    %c0_i32_1 = arith.constant 0 : i32
    %c0_i32_2 = arith.constant 0 : i32
    return %c0_i32, %c0_i32_0, %c0_i32_1 : i32, i32, i32
  }
  func.func @transform_2(%arg0: i32) -> (i32, i32) {
    %c0_i32 = arith.constant 0 : i32
    %c0_i32_0 = arith.constant 0 : i32
    %c0_i32_1 = arith.constant 0 : i32
    return %c0_i32, %c0_i32_0 : i32, i32
  }
  func.func @transform_3(%arg0: i32) -> (i32, i32) {
    %c0_i32 = arith.constant 0 : i32
    %c0_i32_0 = arith.constant 0 : i32
    %c0_i32_1 = arith.constant 0 : i32
    return %c0_i32, %c0_i32_0 : i32, i32
  }
  func.func @transform_4(%arg0: i32) -> (i32, i32) {
    %c0_i32 = arith.constant 0 : i32
    %c0_i32_0 = arith.constant 0 : i32
    return %arg0, %c0_i32 : i32, i32
  }
}

</mosaic_0001>

<llo_original>
// kernel: tpu_custom_call.1
$region0: #{tpu_custom_call.1}
  #allocation0 [shape = 'u32[]', space=smem, size = 0x4, offset = 0x4, fixed_abs, tag = 'smem constant byte address 0x4 - core index']
  #allocation1 [shape = 'u32[72,128]{1,0:T(1,128)}', space=vmem, size = 0x9000, scoped, tag = 'internal scratch']
  %s0 = inlined_call_operand.vmem [shape: s32[16,1], index: 0, kind: input, shape index: {}]
  %s1 = inlined_call_operand.hbm [shape: bf16[3,64,128], index: 1, kind: input, shape index: {}]
  %s2 = inlined_call_operand.vmem [shape: f32[1,128], index: 2, kind: input, shape index: {}]
  %s3 = inlined_call_operand.vmem [shape: f32[1,128], index: 3, kind: input, shape index: {}]
  %s4 = inlined_call_operand.hbm [shape: f32[16,128], index: 4, kind: output, shape index: {}]
  %s5 = sld [smem:[#allocation0]]
  $region53: #{tpu_custom_call.1} parent=0
    _
  %s7 = ssub.s32 1, %s5
  %s8 = scalar_select 0, %s7, %s5
  $region1: #{tpu_custom_call.1} parent=0
    #allocation2 [shape = 'u8[49152]{0}', space=vmem, size = 0xc000, scoped, tag = 'input window, operand 1, single buffered']
    #allocation3 [shape = 's32[2]{0}', space=sflag, size = 0x8, scoped, tag = 'scoped memory for tpu_custom_call.1']
    #allocation4 [shape = 's32[2]{0}', space=sflag, size = 0x8, scoped, tag = 'scoped memory for tpu_custom_call.1']
    #allocation5 [shape = 'u8[8192]{0}', space=vmem, size = 0x2000, scoped, tag = 'output window, operand 0']
    %9 = vsyncpa [#allocation3], 0
    %10 = vsyncpa [#allocation4], 0
    %s11 = scalar_lea.sflag [#allocation4], 1
    %12 = vsyncpa %s11, 0
    loop: start=0, step=1, limit=4
    $region2: #{tpu_custom_call.1} parent=1 // loop_pre_header
      _
    $region3: #{tpu_custom_call.1} parent=1 // loop_header
      %s14 = sphi 0, %s18
      %p15 = scmp.ge.s32.totalorder %s14, 4
      %s24 = sphi 0, %s26
      %s27 = sphi 0, %s24
      %s28 = sphi 0, %s27
      %s44 = sphi 0, %s28
      %s48 = sphi 0, %s48
      %s50 = sphi 0, %s48
      %s51 = sphi 0, %s50
      %s65 = sphi 0, %s51
      %s69 = sphi 0, %s69
      %s71 = sphi 0, %s69
      %s72 = sphi 0, %s71
      %s86 = sphi 0, %s72
      %s90 = sphi 0, %s90
      %s92 = sphi 0, %s90
      %s93 = sphi 0, %s92
      %s107 = sphi 0, %s93
      %s113 = sphi 0, %s115
      %s116 = sphi 0, %s113
      %s117 = sphi 0, %s116
      %s133 = sphi 0, %s117
    $region4: #{tpu_custom_call.1} parent=1 // loop_header_branch
      %17 = sbr.rel (%p15) target = $region8
    $region5: #{tpu_custom_call.1} parent=1 // loop_body
      %s19 = ssub.s32 %s14, 1
      %s20 = ssub.s32 %s14, 2
      %s21 = sadd.s32 %s14, 1
      %s22 = ssub.s32 %s14, %s21
      %p23 = scmp.eq.s32.totalorder %s22, 0
      %s25 = sadd.s32 %s24, 1
      %s26 = scalar_select %p23, %s24, %s25
      %p29 = pneg %p23
      %p30 = scmp.eq.s32.totalorder %s14, 1
      %p31 = por %p29, %p30
      %p32 = scmp.ne.s32.totalorder %s24, %s27
      %p33 = scmp.eq.s32.totalorder %s14, 0
      %p34 = por %p32, %p33
      %p35 = scmp.ne.s32.totalorder %s24, %s27
      %p36 = scmp.eq.s32.totalorder %s19, 1
      %p37 = por %p35, %p36
      %p38 = scmp.ne.s32.totalorder %s27, %s28
      %p39 = scmp.eq.s32.totalorder %s19, 0
      %p40 = por %p38, %p39
      %p41 = scmp.ne.s32.totalorder %s27, %s28
      %p42 = scmp.eq.s32.totalorder %s20, 1
      %p43 = por %p41, %p42
      %p45 = scmp.ne.s32.totalorder %s28, %s44
      %p46 = scmp.eq.s32.totalorder %s20, 0
      %p47 = por %p45, %p46
      %s49 = sadd.s32 %s48, 1
      %p52 = scmp.eq.s32.totalorder %s14, 1
      %p53 = scmp.ne.s32.totalorder %s48, %s50
      %p54 = scmp.eq.s32.totalorder %s14, 0
      %p55 = por %p53, %p54
      %p56 = scmp.ne.s32.totalorder %s48, %s50
      %p57 = scmp.eq.s32.totalorder %s19, 1
      %p58 = por %p56, %p57
      %p59 = scmp.ne.s32.totalorder %s50, %s51
      %p60 = scmp.eq.s32.totalorder %s19, 0
      %p61 = por %p59, %p60
      %p62 = scmp.ne.s32.totalorder %s50, %s51
      %p63 = scmp.eq.s32.totalorder %s20, 1
      %p64 = por %p62, %p63
      %p66 = scmp.ne.s32.totalorder %s51, %s65
      %p67 = scmp.eq.s32.totalorder %s20, 0
      %p68 = por %p66, %p67
      %s70 = sadd.s32 %s69, 1
      %p73 = scmp.eq.s32.totalorder %s14, 1
      %p74 = scmp.ne.s32.totalorder %s69, %s71
      %p75 = scmp.eq.s32.totalorder %s14, 0
      %p76 = por %p74, %p75
      %p77 = scmp.ne.s32.totalorder %s69, %s71
      %p78 = scmp.eq.s32.totalorder %s19, 1
      %p79 = por %p77, %p78
      %p80 = scmp.ne.s32.totalorder %s71, %s72
      %p81 = scmp.eq.s32.totalorder %s19, 0
      %p82 = por %p80, %p81
      %p83 = scmp.ne.s32.totalorder %s71, %s72
      %p84 = scmp.eq.s32.totalorder %s20, 1
      %p85 = por %p83, %p84
      %p87 = scmp.ne.s32.totalorder %s72, %s86
      %p88 = scmp.eq.s32.totalorder %s20, 0
      %p89 = por %p87, %p88
      %s91 = sadd.s32 %s90, 1
      %p94 = scmp.eq.s32.totalorder %s14, 1
      %p95 = scmp.ne.s32.totalorder %s90, %s92
      %p96 = scmp.eq.s32.totalorder %s14, 0
      %p97 = por %p95, %p96
      %p98 = scmp.ne.s32.totalorder %s90, %s92
      %p99 = scmp.eq.s32.totalorder %s19, 1
      %p100 = por %p98, %p99
      %p101 = scmp.ne.s32.totalorder %s92, %s93
      %p102 = scmp.eq.s32.totalorder %s19, 0
      %p103 = por %p101, %p102
      %p104 = scmp.ne.s32.totalorder %s92, %s93
      %p105 = scmp.eq.s32.totalorder %s20, 1
      %p106 = por %p104, %p105
      %p108 = scmp.ne.s32.totalorder %s93, %s107
      %p109 = scmp.eq.s32.totalorder %s20, 0
      %p110 = por %p108, %p109
      %s111 = ssub.s32 %s14, %s21
      %p112 = scmp.eq.s32.totalorder %s111, 0
      %s114 = sadd.s32 %s113, 1
      %s115 = scalar_select %p112, %s113, %s114
      %p118 = pneg %p112
      %p119 = scmp.eq.s32.totalorder %s14, 1
      %p120 = por %p118, %p119
      %p121 = scmp.ne.s32.totalorder %s113, %s116
      %p122 = scmp.eq.s32.totalorder %s14, 0
      %p123 = por %p121, %p122
      %p124 = scmp.ne.s32.totalorder %s113, %s116
      %p125 = scmp.eq.s32.totalorder %s19, 1
      %p126 = por %p124, %p125
      %p127 = scmp.ne.s32.totalorder %s116, %s117
      %p128 = scmp.eq.s32.totalorder %s19, 0
      %p129 = por %p127, %p128
      %p130 = scmp.ne.s32.totalorder %s116, %s117
      %p131 = scmp.eq.s32.totalorder %s20, 1
      %p132 = por %p130, %p131
      %p134 = scmp.ne.s32.totalorder %s117, %s133
      %p135 = scmp.eq.s32.totalorder %s20, 0
      %p136 = por %p134, %p135
      %p137 = scmp.le.s32.totalorder 1, %s14
      %p138 = scmp.lt.s32.totalorder %s14, 3
      %p139 = pnand %p137, %p138
      %p140 = pneg %p139
      // Predicated region
      $region9: #{tpu_custom_call.1} parent=5 // pred_check
        _
      $region10: #{tpu_custom_call.1} parent=5 // pred_check_branch
        %142 = sbr.rel (%p139) target = $region12
      $region11: #{tpu_custom_call.1} parent=5 // pred_region
        %s143 = ssub.s32 %s14, 1
        // Predicated region
        $region13: #{tpu_custom_call.1} parent=11 // pred_check
          %p144 = pneg %p61
        $region14: #{tpu_custom_call.1} parent=11 // pred_check_branch
          %146 = sbr.rel (%p144) target = $region16
        $region15: #{tpu_custom_call.1} parent=11 // pred_region
          %148 = vsyncadd [#allocation3], 0
          %s149 = sshll.u32 %s1, 4
          %s150 = int_to_ptr.hbm [resolvable:$true] %s149
          %s151 = sshll.u32 [#allocation2], 4
          %s152 = int_to_ptr.vmem [resolvable:$true] %s151
          %157 = dma.hbm_to_vmem [thread:$0]  %s150, 1536, %s152, [#allocation3], 64, 64, 4
        $region16: #{tpu_custom_call.1} parent=11 // pred_fallthru
          _
        // Predicated region
        $region17: #{tpu_custom_call.1} parent=11 // pred_check
          %p158 = pneg %p82
        $region18: #{tpu_custom_call.1} parent=11 // pred_check_branch
          %160 = sbr.rel (%p158) target = $region20
        $region19: #{tpu_custom_call.1} parent=11 // pred_region
          _
        $region20: #{tpu_custom_call.1} parent=11 // pred_fallthru
          _
        // Predicated region
        $region21: #{tpu_custom_call.1} parent=11 // pred_check
          %p161 = pneg %p103
        $region22: #{tpu_custom_call.1} parent=11 // pred_check_branch
          %163 = sbr.rel (%p161) target = $region24
        $region23: #{tpu_custom_call.1} parent=11 // pred_region
          _
        $region24: #{tpu_custom_call.1} parent=11 // pred_fallthru
          _
      $region12: #{tpu_custom_call.1} parent=5 // pred_fallthru
        _
      %p164 = scmp.lt.s32.totalorder %s14, 2
      // Predicated region
      $region25: #{tpu_custom_call.1} parent=5 // pred_check
        %p165 = pneg %p164
      $region26: #{tpu_custom_call.1} parent=5 // pred_check_branch
        %167 = sbr.rel (%p165) target = $region28
      $region27: #{tpu_custom_call.1} parent=5 // pred_region
        // Predicated region
        $region29: #{tpu_custom_call.1} parent=27 // pred_check
          %p168 = pneg %p34
        $region30: #{tpu_custom_call.1} parent=27 // pred_check_branch
          %170 = sbr.rel (%p168) target = $region32
        $region31: #{tpu_custom_call.1} parent=27 // pred_region
          %p171 = scmp.lt.s32.totalorder %s14, 1
          %s172 = scalar_select %p171, %s14, 1
          %s173 = smul.addr %s172, 8
          %s174 = scalar_lea.vmem %s0, %s173
        $region32: #{tpu_custom_call.1} parent=27 // pred_fallthru
          _
      $region28: #{tpu_custom_call.1} parent=5 // pred_fallthru
        _
      %p175 = scmp.le.s32.totalorder 1, %s14
      %p176 = scmp.lt.s32.totalorder %s14, 3
      %p177 = pnand %p175, %p176
      %p178 = pneg %p177
      // Predicated region
      $region33: #{tpu_custom_call.1} parent=5 // pred_check
        _
      $region34: #{tpu_custom_call.1} parent=5 // pred_check_branch
        %180 = sbr.rel (%p177) target = $region36
      $region35: #{tpu_custom_call.1} parent=5 // pred_region
        %s181 = ssub.s32 %s14, 1
        // Predicated region
        $region37: #{tpu_custom_call.1} parent=35 // pred_check
          %p182 = pneg %p61
        $region38: #{tpu_custom_call.1} parent=35 // pred_check_branch
          %184 = sbr.rel (%p182) target = $region40
        $region39: #{tpu_custom_call.1} parent=35 // pred_region
          %186 = dma.done [#allocation3], 1536
        $region40: #{tpu_custom_call.1} parent=35 // pred_fallthru
          _
        %p187 = scmp.lt.s32.totalorder %s19, 1
        %s188 = scalar_select %p187, %s19, 1
        %s189 = smul.addr %s188, 8
        %s190 = scalar_lea.vmem %s0, %s189
        %p191 = pneg %p40
        %p192 = pneg %p37
        %p193 = pneg %p61
        %p194 = pneg %p58
        %p195 = pneg %p82
        %p196 = pneg %p79
        %p197 = pneg %p103
        %p198 = pneg %p100
        %p199 = pneg %p129
        %p200 = pneg %p126
        %s201 = sand.u32 %s116, 1
        %s202 = scalar_lea.sflag [#allocation4], %s201
        %s203 = sand.u32 %s116, 1
        %s204 = smul.addr %s203, 8
        %s205 = scalar_lea.vmem [#allocation5], %s204
        %p206 = scmp.lt.s32.totalorder %s19, 1
        %s207 = scalar_select %p206, %s19, 1
        %s208 = smul.addr %s207, 8
        %s209 = scalar_lea.vmem %s0, %s208
        %v211 = vld [vmem:[%s209] sm:$0xff]
        %v212 = vlaneseq
        %v213 = vand.u32 %v212, 127
        %214 = vset.pattern.permute.xlu0 0
        %215 = vperm.xlu0 %214, %v211
        %v216 = vpop.permute.xlu0 %215
        %vm217 = vcmp.eq.s32.totalorder %v216, %v213
        %v218 = vsel %vm217, 1, 0
        %v219 = vcvt.s32.f32 %v218
        %v220 = vpack.c.bf16 %v219, %v219
        %v221 = vld [vmem:[#allocation2] sm:$0xf]
        %v222 = vld [vmem:[#allocation2 + $0x4] sm:$0xf]
        %v223 = vld [vmem:[#allocation2 + $0x8] sm:$0xf]
        %v224 = vld [vmem:[#allocation2 + $0xc] sm:$0xf]
        %v225 = vld [vmem:[#allocation2 + $0x10] sm:$0xf]
        %v226 = vld [vmem:[#allocation2 + $0x14] sm:$0xf]
        %v227 = vld [vmem:[#allocation2 + $0x18] sm:$0xf]
        %v228 = vld [vmem:[#allocation2 + $0x1c] sm:$0xf]
        %s229 = scalar_lea.vmem [#allocation2], 32
        %v230 = vld [vmem:[%s229] sm:$0xf]
        %v231 = vld [vmem:[%s229 + $0x4] sm:$0xf]
        %v232 = vld [vmem:[%s229 + $0x8] sm:$0xf]
        %v233 = vld [vmem:[%s229 + $0xc] sm:$0xf]
        %v234 = vld [vmem:[%s229 + $0x10] sm:$0xf]
        %v235 = vld [vmem:[%s229 + $0x14] sm:$0xf]
        %v236 = vld [vmem:[%s229 + $0x18] sm:$0xf]
        %v237 = vld [vmem:[%s229 + $0x1c] sm:$0xf]
        %v246 = vunpack.c.l.b16 %v230
        %v247 = vunpack.c.l.b16 %v231
        %v248 = vunpack.c.l.b16 %v232
        %v249 = vunpack.c.l.b16 %v233
        %v250 = vunpack.c.l.b16 %v234
        %v251 = vunpack.c.l.b16 %v235
        %v252 = vunpack.c.l.b16 %v236
        %v253 = vunpack.c.l.b16 %v237
        %v254 = vpack.c.b16 %v247, %v246
        %v255 = vpack.c.b16 %v249, %v248
        %v256 = vpack.c.b16 %v251, %v250
        %v257 = vpack.c.b16 %v253, %v252
        %vm262 = vcmask 523264
        %v264 = vsel %vm262, %v220, 0
        %266 = vmatpush.bf16.msra.mxu0 0
        %267 = vmatpush.bf16.msra.mxu0 0
        %268 = vmatpush.bf16.msra.mxu0 0
        %269 = vmatpush.bf16.msra.mxu0 0
        %270 = vmatpush.bf16.msra.mxu0 %v257
        %271 = vmatpush.bf16.msra.mxu0 %v256
        %272 = vmatpush.bf16.msra.mxu0 %v255
        %273 = vmatpush.bf16.msra.mxu0 %v254
        %274 = vmatmul.bf16.gmra.mxu0 %v264
        %v275 = vpop.f32.mrf.mxu0
        %v276 = vadd.f32 0.0, %v275
        %v277 = vpop.f32.mrf.mxu0
        %278 = vdwg.mxu0
        %v287 = vunpack.c.l.b16 %v221
        %v288 = vunpack.c.l.b16 %v222
        %v289 = vunpack.c.l.b16 %v223
        %v290 = vunpack.c.l.b16 %v224
        %v291 = vunpack.c.l.b16 %v225
        %v292 = vunpack.c.l.b16 %v226
        %v293 = vunpack.c.l.b16 %v227
        %v294 = vunpack.c.l.b16 %v228
        %v295 = vpack.c.b16 %v288, %v287
        %v296 = vpack.c.b16 %v290, %v289
        %v297 = vpack.c.b16 %v292, %v291
        %v298 = vpack.c.b16 %v294, %v293
        %303 = vmatpush.bf16.msra.mxu0 0
        %304 = vmatpush.bf16.msra.mxu0 0
        %305 = vmatpush.bf16.msra.mxu0 0
        %306 = vmatpush.bf16.msra.mxu0 0
        %307 = vmatpush.bf16.msra.mxu0 %v298
        %308 = vmatpush.bf16.msra.mxu0 %v297
        %309 = vmatpush.bf16.msra.mxu0 %v296
        %310 = vmatpush.bf16.msra.mxu0 %v295
        %311 = vmatmul.bf16.gmra.mxu0 %v264
        %v312 = vpop.f32.mrf.mxu0
        %v313 = vadd.f32 %v276, %v312
        %v314 = vpop.f32.mrf.mxu0
        %315 = vdwg.mxu0
        %s316 = scalar_lea.vmem [#allocation2], 64
        %v317 = vld [vmem:[%s316] sm:$0xf]
        %v318 = vld [vmem:[%s316 + $0x4] sm:$0xf]
        %v319 = vld [vmem:[%s316 + $0x8] sm:$0xf]
        %v320 = vld [vmem:[%s316 + $0xc] sm:$0xf]
        %v321 = vld [vmem:[%s316 + $0x10] sm:$0xf]
        %v322 = vld [vmem:[%s316 + $0x14] sm:$0xf]
        %v323 = vld [vmem:[%s316 + $0x18] sm:$0xf]
        %v324 = vld [vmem:[%s316 + $0x1c] sm:$0xf]
        %v333 = vunpack.c.l.b16 %v317
        %v334 = vunpack.c.l.b16 %v318
        %v335 = vunpack.c.l.b16 %v319
        %v336 = vunpack.c.l.b16 %v320
        %v337 = vunpack.c.l.b16 %v321
        %v338 = vunpack.c.l.b16 %v322
        %v339 = vunpack.c.l.b16 %v323
        %v340 = vunpack.c.l.b16 %v324
        %v341 = vpack.c.b16 %v334, %v333
        %v342 = vpack.c.b16 %v336, %v335
        %v343 = vpack.c.b16 %v338, %v337
        %v344 = vpack.c.b16 %v340, %v339
        %349 = vmatpush.bf16.msra.mxu0 0
        %350 = vmatpush.bf16.msra.mxu0 0
        %351 = vmatpush.bf16.msra.mxu0 0
        %352 = vmatpush.bf16.msra.mxu0 0
        %353 = vmatpush.bf16.msra.mxu0 %v344
        %354 = vmatpush.bf16.msra.mxu0 %v343
        %355 = vmatpush.bf16.msra.mxu0 %v342
        %356 = vmatpush.bf16.msra.mxu0 %v341
        %357 = vmatmul.bf16.gmra.mxu0 %v264
        %v358 = vpop.f32.mrf.mxu0
        %v359 = vadd.f32 0.0, %v358
        %v360 = vpop.f32.mrf.mxu0
        %361 = vdwg.mxu0
        %v362 = vadd.f32 %v313, %v359
        %363 = vadd.xlane.f32.xlu0 %v362
        %v364 = vpop.xlane.xlu0 %363
        %v365 = vmul.f32 %v362, %v362
        %366 = vadd.xlane.f32.xlu0 %v365
        %v367 = vpop.xlane.xlu0 %366
        %v368 = vmul.f32 %v364, 0.0078125
        %v369 = vmul.f32 %v367, 0.0078125
        %v370 = vmul.f32 %v368, %v368
        %v371 = vsub.f32 %v369, %v370
        %v372 = vmax.f32 %v371, 0.0
        %v373 = vadd.f32 %v372, 1e-05
        %v374 = vrsqrt.pop %v373
        %v375 = vmul.f32 %v374, %v373
        %v376 = vmul.f32 %v375, %v374
        %v377 = vmul.f32 0.5, %v376
        %v378 = vsub.f32 1.5, %v377
        %v379 = vmul.f32 %v374, %v378
        %vm380 = vweird.f32 %v373
        %vm381 = vweird.f32 %v374
        %vm382 = vmor %vm380, %vm381
        %v383 = vsel %vm382, %v374, %v379
        %v384 = vsub.f32 %v362, %v368
        %v385 = vmul.f32 %v384, %v383
        %v386 = vld [vmem:[%s2] sm:$0x1]
        %v388 = vperm.slane %v386, 0
        %v390 = vmul.f32 %v385, %v388
        %v391 = vld [vmem:[%s3] sm:$0x1]
        %v393 = vperm.slane %v391, 0
        %v395 = vadd.f32 %v390, %v393
        %396 = vst [vmem:[%s205] sm:$0xff] %v395
        %s397 = sand.u32 %s116, 1
        %s398 = scalar_lea.sflag [#allocation4], %s397
        %s399 = sand.u32 %s116, 1
        %s400 = smul.addr %s399, 8
        %s401 = scalar_lea.vmem [#allocation5], %s400
        // Predicated region
        $region41: #{tpu_custom_call.1} parent=35 // pred_check
          %p402 = pneg %p126
        $region42: #{tpu_custom_call.1} parent=35 // pred_check_branch
          %404 = sbr.rel (%p402) target = $region44
        $region43: #{tpu_custom_call.1} parent=35 // pred_region
          %406 = vsyncadd %s398, 0
          %s407 = smul.addr %s19, 8
          %s408 = scalar_lea.hbm %s4, %s407
          %s410 = sshll.u32 %s401, 4
          %s411 = int_to_ptr.vmem [resolvable:$true] %s410
          %s412 = sshll.u32 %s408, 4
          %s413 = int_to_ptr.hbm [resolvable:$true] %s412
          %415 = dma.vmem_to_hbm [thread:$0]  %s411, 128, %s413, %s398
        $region44: #{tpu_custom_call.1} parent=35 // pred_fallthru
          _
      $region36: #{tpu_custom_call.1} parent=5 // pred_fallthru
        _
      %p416 = scmp.le.s32.totalorder 2, %s14
      // Predicated region
      $region45: #{tpu_custom_call.1} parent=5 // pred_check
        %p417 = pneg %p416
      $region46: #{tpu_custom_call.1} parent=5 // pred_check_branch
        %419 = sbr.rel (%p417) target = $region48
      $region47: #{tpu_custom_call.1} parent=5 // pred_region
        %s420 = ssub.s32 %s14, 2
        // Predicated region
        $region49: #{tpu_custom_call.1} parent=47 // pred_check
          %p421 = pneg %p132
        $region50: #{tpu_custom_call.1} parent=47 // pred_check_branch
          %423 = sbr.rel (%p421) target = $region52
        $region51: #{tpu_custom_call.1} parent=47 // pred_region
          %s424 = sand.u32 %s117, 1
          %s425 = scalar_lea.sflag [#allocation4], %s424
          %s426 = sand.u32 %s117, 1
          %s427 = smul.addr %s426, 8
          %s428 = scalar_lea.vmem [#allocation5], %s427
          %430 = dma.done %s425, 128
        $region52: #{tpu_custom_call.1} parent=47 // pred_fallthru
          _
      $region48: #{tpu_custom_call.1} parent=5 // pred_fallthru
        _
    $region6: #{tpu_custom_call.1} parent=1 // loop_footer
      %s18 = sadd.s32 1, %s14
    $region7: #{tpu_custom_call.1} parent=1 // loop_footer_branch
      %13 = sbr.rel target = $region3
    $region8: #{tpu_custom_call.1} parent=1 // loop_exit
      _
    %431 = vsyncpa [#allocation3], 1
    %s432 = scalar_lea.sflag [#allocation3], 1
    %433 = vsyncpa %s432, 1
    %434 = vsyncpa [#allocation4], 1
    %s435 = scalar_lea.sflag [#allocation4], 1
    %436 = vsyncpa %s435, 1

</llo_original>
